<compile_context>
chip_gen: v6e
topology: v6e:2x2x1
jax: 0.10.0
libtpu: 0.0.40
codegen_flags: <defaults>
</compile_context>

<pallas_src>
import functools

import numpy as np
import jax
import jax.numpy as jnp
from jax.experimental import pallas as pl
from jax.experimental.pallas import tpu as pltpu


_TARGET_BLOCK_BYTES = 4 * 1024 * 1024   # ~4 MiB of native-dtype bytes per input block


def _position_prior_kernel(x_ref, o_ref, *, log_z, f_total, tf, mask_f):
    """grid = (batch tiles, feature tiles).

    x_ref: (tb, tf) native dtype.  o_ref: (1, 1, tb) float32, lane-dense; the
    same output block is revisited across the (arbitrary) feature axis and is
    used directly as the f32 accumulator.
    """
    j = pl.program_id(1)

    @pl.when(j == 0)
    def _init():
        o_ref[...] = jnp.full(o_ref.shape, log_z, dtype=o_ref.dtype)

    x = x_ref[...].astype(jnp.float32)            # cast-on-load, accumulate in f32
    if mask_f:
        # The last feature tile reads past F: zero the out-of-range columns so
        # they cannot contaminate valid rows (we reduce across this axis).
        col = jax.lax.broadcasted_iota(jnp.int32, x.shape, 1) + j * tf
        x = jnp.where(col < f_total, x, 0.0)
    r2 = jnp.sum(x * x, axis=1)                   # (tb,) per-row partial sum of squares
    o_ref[...] += (-0.5 * r2).reshape(o_ref.shape)


def _plan_tiles(B, F, itemsize, block_b=None, block_f=None):
    """Pick (tb, tf, mask_f): ~4 MiB native-byte blocks, sublane-pack-aligned rows,
    128-multiple feature tiles only when a single-F block would not fit."""
    pack = max(8, 32 // itemsize)                 # rows per packed vreg: 8/16/32
    padded_f = pl.cdiv(F, 128) * 128              # lane padding
    b_cap = pl.cdiv(B, pack) * pack               # no point exceeding the packed batch

    def _round_rows(n):
        n = max(pack, min(int(n), b_cap))
        step = 128 if (n >= 128 and b_cap >= 128) else pack
        return max(pack, (n // step) * step)

    if block_b is not None:
        tb = _round_rows(block_b)
    else:
        tb = _round_rows(_TARGET_BLOCK_BYTES // max(1, padded_f * itemsize))

    if block_f is not None:
        tf = pl.cdiv(int(block_f), 128) * 128
    elif tb * padded_f * itemsize > _TARGET_BLOCK_BYTES:
        # Very large N*D: add an inner reduction axis with 128-lane tiles.
        tf = max(128, (_TARGET_BLOCK_BYTES // max(1, tb * itemsize * 128)) * 128)
    else:
        tf = padded_f                              # i.e. no feature tiling

    if tf >= F:
        tf = F                                     # single full-F block (always legal)
    mask_f = (tf < F) and (F % tf != 0)
    return tb, tf, mask_f


def _batch_semantics(num_b):
    """CORE_PARALLEL on v7x (2 TensorCores) when the grid splits evenly; plain
    PARALLEL elsewhere (no-op on single-TC v5e/v6e)."""
    kind = ""
    try:
        kind = jax.devices()[0].device_kind.lower()
    except Exception:
        pass
    if "v7" in kind and hasattr(pltpu, "CORE_PARALLEL") and num_b >= 2 and num_b % 2 == 0:
        return pltpu.CORE_PARALLEL
    return pltpu.PARALLEL


def position_prior_log_likelihood(x, *, block_b=None, block_f=None):
    """Pallas equivalent of PositionPrior().forward(x) for x of shape (B, N, D)."""
    B, N, D = x.shape
    F = N * D
    dof = (N - 1) * D
    log_z = -0.5 * dof * float(np.log(2.0 * np.pi))

    x2d = x.reshape(B, F)                          # free contiguous reshape, native dtype
    itemsize = jnp.dtype(x2d.dtype).itemsize

    tb, tf, mask_f = _plan_tiles(B, F, itemsize, block_b=block_b, block_f=block_f)
    num_b = pl.cdiv(B, tb)
    num_f = pl.cdiv(F, tf)

    kernel = functools.partial(
        _position_prior_kernel, log_z=log_z, f_total=F, tf=tf, mask_f=mask_f)

    cost = pl.CostEstimate(
        flops=2 * B * F,                           # square + add per element
        transcendentals=0,
        bytes_accessed=B * F * itemsize + num_b * tb * 4)

    out = pl.pallas_call(
        kernel,
        out_shape=jax.ShapeDtypeStruct((num_b, 1, tb), jnp.float32),
        grid=(num_b, num_f),
        in_specs=[pl.BlockSpec((tb, tf), lambda i, j: (i, j))],
        out_specs=pl.BlockSpec((1, 1, tb), lambda i, j: (i, 0, 0)),
        compiler_params=pltpu.CompilerParams(
            dimension_semantics=(_batch_semantics(num_b), pltpu.ARBITRARY),
            vmem_limit_bytes=32 * 1024 * 1024,     # explicit; safe on v5e/v6e/v7x
        ),
        cost_estimate=cost,
    )(x2d)
    # (num_b, 1, tb) -> flat; rows >= B came from unspecified (OOB) input rows
    # of the partial final batch block and are sliced off here.
    return out.reshape(num_b * tb)[:B]


def _reference(x):
    B, N, D = x.shape
    dof = (N - 1) * D
    xf = x.astype(jnp.float32)
    return -0.5 * jnp.sum(xf * xf, axis=(1, 2)) - 0.5 * dof * np.log(2.0 * np.pi)


if __name__ == "__main__":
    key = jax.random.PRNGKey(0)
    k1, k2, k3 = jax.random.split(key, 3)

    # --- Test 1: module-sized shapes (batch=2, 8 nodes, 3 spatial dims), f32.
    B, N, D = 2, 8, 3
    x = jax.random.normal(k1, (B, N, D), dtype=jnp.float32)
    # The prior assumes zero center of gravity (the PyTorch code asserts it).
    x = x - jnp.mean(x, axis=1, keepdims=True)
    out = jax.block_until_ready(position_prior_log_likelihood(x))
    ref = _reference(x)
    assert out.shape == (B,)
    assert np.allclose(np.asarray(out), np.asarray(ref), rtol=1e-5, atol=1e-5)

    # --- Test 2: ragged batch (B=20, tb=16 -> partial last block, no jnp.pad)
    #             with native bf16 HBM traffic and lane-dense F = 128.
    B2, N2, D2 = 20, 16, 8
    x2 = jax.random.normal(k2, (B2, N2, D2), dtype=jnp.float32)
    x2 = x2 - jnp.mean(x2, axis=1, keepdims=True)
    x2b = x2.astype(jnp.bfloat16)
    out2 = jax.block_until_ready(position_prior_log_likelihood(x2b, block_b=8))
    ref2 = _reference(x2b)
    assert out2.shape == (B2,)
    assert np.allclose(np.asarray(out2), np.asarray(ref2), rtol=1e-4, atol=1e-4)

    # --- Test 3: force the inner feature-reduction axis (tf=128 over F=160 ->
    #             ragged tail handled by the in-kernel column mask), the path
    #             that kicks in automatically for very large N*D.
    B3, N3, D3 = 4, 8, 20
    x3 = jax.random.normal(k3, (B3, N3, D3), dtype=jnp.float32)
    x3 = x3 - jnp.mean(x3, axis=1, keepdims=True)
    out3 = jax.block_until_ready(position_prior_log_likelihood(x3, block_f=128))
    ref3 = _reference(x3)
    assert out3.shape == (B3,)
    assert np.allclose(np.asarray(out3), np.asarray(ref3), rtol=1e-5, atol=1e-5)

    print("KERNEL_OK")
</pallas_src>

<mosaic_0001>
module attributes {stable_mosaic.version = 11 : i64} {
  func.func @_position_prior_kernel(%arg0: i32, %arg1: i32, %arg2: memref<8x24xf32, #tpu.memory_space<vmem>>, %arg3: memref<1x1x8xf32, #tpu.memory_space<vmem>>) attributes {dimension_semantics = [#tpu.dimension_semantics<parallel>, #tpu.dimension_semantics<arbitrary>], iteration_bounds = array<i64: 1, 1>, scalar_prefetch = 0 : i64, scratch_operands = 0 : i64, tpu.core_type = #tpu.core_type<tc>, window_params = [{transform_indices = @transform_0, window_bounds = array<i64: 8, 24>}, {transform_indices = @transform_1, window_bounds = array<i64: 1, 1, 8>}]} {
    %c0_i32 = arith.constant 0 : i32
    %0 = arith.cmpi eq, %arg1, %c0_i32 : i32
    %1 = arith.extui %0 : i1 to i32
    %c0_i32_0 = arith.constant 0 : i32
    %2 = arith.cmpi ne, %1, %c0_i32_0 : i32
    scf.if %2 {
      %cst_9 = arith.constant -19.2977085 : f32
      %12 = vector.broadcast %cst_9 : f32 to vector<1x1x8xf32>
      %c0_10 = arith.constant 0 : index
      %c0_11 = arith.constant 0 : index
      %c0_12 = arith.constant 0 : index
      %13 = vector.load %arg3[%c0_10, %c0_11, %c0_12] : memref<1x1x8xf32, #tpu.memory_space<vmem>>, vector<1x1x8xf32>
      tpu.vector_store %arg3[%c0_10, %c0_11, %c0_12], %12 {strides = array<i32>} : memref<1x1x8xf32, #tpu.memory_space<vmem>>, vector<1x1x8xf32>,
    } else {
    }
    %c0 = arith.constant 0 : index
    %c0_1 = arith.constant 0 : index
    %3 = vector.load %arg2[%c0, %c0_1] : memref<8x24xf32, #tpu.memory_space<vmem>>, vector<8x24xf32>
    %4 = arith.mulf %3, %3 : vector<8x24xf32>
    %cst = arith.constant dense<0.000000e+00> : vector<8xf32>
    %5 = vector.multi_reduction <add>, %4, %cst [1] : vector<8x24xf32> to vector<8xf32>
    %c0_2 = arith.constant 0 : index
    %c0_3 = arith.constant 0 : index
    %c0_4 = arith.constant 0 : index
    %6 = vector.load %arg3[%c0_2, %c0_3, %c0_4] : memref<1x1x8xf32, #tpu.memory_space<vmem>>, vector<1x1x8xf32>
    %cst_5 = arith.constant -5.000000e-01 : f32
    %7 = vector.broadcast %cst_5 : f32 to vector<8xf32>
    %8 = arith.mulf %7, %5 : vector<8xf32>
    %9 = vector.shape_cast %8 : vector<8xf32> to vector<1x1x8xf32>
    %10 = arith.addf %6, %9 : vector<1x1x8xf32>
    %c0_6 = arith.constant 0 : index
    %c0_7 = arith.constant 0 : index
    %c0_8 = arith.constant 0 : index
    %11 = vector.load %arg3[%c0_6, %c0_7, %c0_8] : memref<1x1x8xf32, #tpu.memory_space<vmem>>, vector<1x1x8xf32>
    tpu.vector_store %arg3[%c0_6, %c0_7, %c0_8], %10 {strides = array<i32>} : memref<1x1x8xf32, #tpu.memory_space<vmem>>, vector<1x1x8xf32>,
    return
  }
  func.func @transform_0(%arg0: i32, %arg1: i32) -> (i32, i32) {
    %c0_i32 = arith.constant 0 : i32
    return %arg0, %arg1 : i32, i32
  }
  func.func @transform_1(%arg0: i32, %arg1: i32) -> (i32, i32, i32) {
    %c0_i32 = arith.constant 0 : i32
    %c0_i32_0 = arith.constant 0 : i32
    %c0_i32_1 = arith.constant 0 : i32
    return %arg0, %c0_i32, %c0_i32_0 : i32, i32, i32
  }
}

</mosaic_0001>

<llo_original>
// kernel: tpu_custom_call.1
$region0: #{tpu_custom_call.1}
  #allocation0 [shape = 'u32[]', space=smem, size = 0x4, offset = 0x4, fixed_abs, tag = 'smem constant byte address 0x4 - core index']
  #allocation1 [shape = 'u32[144,128]{1,0:T(1,128)}', space=vmem, size = 0x12000, scoped, tag = 'internal scratch']
  %s0 = inlined_call_operand.hbm [shape: f32[2,24], index: 0, kind: input, shape index: {}]
  %s1 = inlined_call_operand.hbm [shape: f32[1,1,8], index: 1, kind: output, shape index: {}]
  %s2 = sld [smem:[#allocation0]]
  $region22: #{tpu_custom_call.1} parent=0
    _
  %s4 = ssub.s32 1, %s2
  %s5 = scalar_select 0, %s4, %s2
  $region1: #{tpu_custom_call.1} parent=0
    #allocation2 [shape = 'u8[4096]{0}', space=vmem, size = 0x1000, scoped, tag = 'input window, operand 0, single buffered']
    #allocation3 [shape = 's32[1]{0}', space=sflag, size = 0x4, scoped, tag = 'scoped memory for tpu_custom_call.1']
    #allocation4 [shape = 's32[1]{0}', space=sflag, size = 0x4, scoped, tag = 'scoped memory for tpu_custom_call.1']
    #allocation5 [shape = 'u8[512]{0}', space=vmem, size = 0x400, scoped, tag = 'output window, operand 0, single buffered']
    %6 = vsyncpa [#allocation3], 0
    %7 = vsyncpa [#allocation4], 0
    // Predicated region
    $region2: #{tpu_custom_call.1} parent=1 // pred_check
      _
    $region3: #{tpu_custom_call.1} parent=1 // pred_check_branch
      %9 = sbr.rel (0) target = $region5
    $region4: #{tpu_custom_call.1} parent=1 // pred_region
      %s11 = ssub.s32 128, 32
      %12 = vsyncadd [#allocation3], %s11
      %s13 = sshll.u32 [#allocation2], 4
      %s14 = int_to_ptr.vmem [resolvable:$true] %s13
      %19 = dma.hbm_to_vmem [thread:$0]  %s0, 32, %s14, [#allocation3], 32, 32, 2
    $region5: #{tpu_custom_call.1} parent=1 // pred_fallthru
      _
    // Predicated region
    $region6: #{tpu_custom_call.1} parent=1 // pred_check
      _
    $region7: #{tpu_custom_call.1} parent=1 // pred_check_branch
      %21 = sbr.rel (0) target = $region9
    $region8: #{tpu_custom_call.1} parent=1 // pred_region
      %22 = dma.done [#allocation3], 128
    $region9: #{tpu_custom_call.1} parent=1 // pred_fallthru
      _
    %p23 = scmp.eq.s32.totalorder 0, 0
    // Predicated region
    $region10: #{tpu_custom_call.1} parent=1 // pred_check
      %p24 = pneg %p23
    $region11: #{tpu_custom_call.1} parent=1 // pred_check_branch
      %26 = sbr.rel (%p24) target = $region13
    $region12: #{tpu_custom_call.1} parent=1 // pred_region
      %vm27 = vcmask 57344
      %28 = vst.msk [vmem:[#allocation5] sm:$0x1] %vm27, -19.297709
    $region13: #{tpu_custom_call.1} parent=1 // pred_fallthru
      _
    %v29 = vld [vmem:[#allocation2] sm:$0xff]
    %v30 = vmul.f32 %v29, %v29
    %vm31 = vcmask 195584
    %v32 = vsel %vm31, %v30, 0.0
    %33 = vadd.xlane.f32.xlu0 %v32
    %v34 = vpop.xlane.xlu0 %33
    %v35 = vld [vmem:[#allocation5] sm:$0x1]
    %v36 = vmul.f32 %v34, -0.5
    %v38 = vlaneseq
    %v39 = vshrl.u32 %v38, 7
    %v40 = vsub.s32 0, %v39
    %v41 = vrot.slane %v36, %v40
    %v42 = vlaneseq
    %v43 = vshrl.u32 %v42, 7
    %v44 = vsub.s32 1, %v43
    %v45 = vrot.slane %v36, %v44
    %v46 = vlaneseq
    %v47 = vshrl.u32 %v46, 7
    %v48 = vsub.s32 2, %v47
    %v49 = vrot.slane %v36, %v48
    %v50 = vlaneseq
    %v51 = vshrl.u32 %v50, 7
    %v52 = vsub.s32 3, %v51
    %v53 = vrot.slane %v36, %v52
    %v54 = vlaneseq
    %v55 = vshrl.u32 %v54, 7
    %v56 = vsub.s32 4, %v55
    %v57 = vrot.slane %v36, %v56
    %v58 = vlaneseq
    %v59 = vshrl.u32 %v58, 7
    %v60 = vsub.s32 5, %v59
    %v61 = vrot.slane %v36, %v60
    %v62 = vlaneseq
    %v63 = vshrl.u32 %v62, 7
    %v64 = vsub.s32 6, %v63
    %v65 = vrot.slane %v36, %v64
    %v66 = vlaneseq
    %v67 = vshrl.u32 %v66, 7
    %v68 = vsub.s32 7, %v67
    %v69 = vrot.slane %v36, %v68
    %v70 = vcombine.low %v41, %v45
    %v71 = vcombine.low %v49, %v53
    %v72 = vcombine.low %v57, %v61
    %v73 = vcombine.low %v65, %v69
    %v75 = vunpack.c.l.s4 1966171168
    %v76 = vunpack.c.0.s8 %v75
    %v77 = vlaneseq
    %v78 = vshrl.u32 %v77, 7
    %v79 = vsub.s32 %v76, %v78
    %v80 = vrot.slane %v70, %v79
    %v82 = vunpack.c.l.s4 1966171168
    %v83 = vunpack.c.0.s8 %v82
    %v84 = vlaneseq
    %v85 = vshrl.u32 %v84, 7
    %v86 = vsub.s32 %v83, %v85
    %v87 = vrot.slane %v71, %v86
    %v89 = vunpack.c.l.s4 1966171168
    %v90 = vunpack.c.0.s8 %v89
    %v91 = vlaneseq
    %v92 = vshrl.u32 %v91, 7
    %v93 = vsub.s32 %v90, %v92
    %v94 = vrot.slane %v72, %v93
    %v96 = vunpack.c.l.s4 1966171168
    %v97 = vunpack.c.0.s8 %v96
    %v98 = vlaneseq
    %v99 = vshrl.u32 %v98, 7
    %v100 = vsub.s32 %v97, %v99
    %v101 = vrot.slane %v73, %v100
    %v102 = vcombine.low %v80, %v87
    %v103 = vcombine.low %v94, %v101
    %v105 = vunpack.c.l.s4 1966171168
    %v106 = vunpack.c.0.s8 %v105
    %v107 = vlaneseq
    %v108 = vshrl.u32 %v107, 7
    %v109 = vsub.s32 %v106, %v108
    %v110 = vrot.slane %v102, %v109
    %v112 = vunpack.c.l.s4 1966171168
    %v113 = vunpack.c.0.s8 %v112
    %v114 = vlaneseq
    %v115 = vshrl.u32 %v114, 7
    %v116 = vsub.s32 %v113, %v115
    %v117 = vrot.slane %v103, %v116
    %v118 = vcombine.low %v110, %v117
    %119 = vset.pattern.permute.xlu0 0
    %120 = vperm.xlu0 %119, %v118
    %v121 = vpop.permute.xlu0 %120
    %v122 = vlaneseq
    %v123 = vand.u32 %v122, 127
    %v124 = vlaneseq
    %v125 = vshrl.u32 %v124, 7
    %v126 = vsub.s32 %v123, %v125
    %v127 = vrot.slane %v121, %v126
    %v129 = vunpack.c.l.s4 1966171168
    %v130 = vunpack.c.0.s8 %v129
    %v131 = vlaneseq
    %v132 = vshrl.u32 %v131, 7
    %v133 = vsub.s32 %v130, %v132
    %v134 = vrot.slane %v127, %v133
    %v136 = vunpack.c.l.s4 1966171168
    %v137 = vunpack.c.0.s8 %v136
    %v138 = vlaneseq
    %v139 = vshrl.u32 %v138, 7
    %v140 = vsub.s32 %v137, %v139
    %v141 = vrot.slane %v134, %v140
    %v143 = vadd.f32 %v35, %v141
    %vm144 = vcmask 57344
    %145 = vst.msk [vmem:[#allocation5] sm:$0x1] %vm144, %v143
    // Predicated region
    $region14: #{tpu_custom_call.1} parent=1 // pred_check
      _
    $region15: #{tpu_custom_call.1} parent=1 // pred_check_branch
      %147 = sbr.rel (0) target = $region17
    $region16: #{tpu_custom_call.1} parent=1 // pred_region
      %s149 = ssub.s32 16, 16
      %150 = vsyncadd [#allocation4], %s149
      %s152 = sshll.u32 [#allocation5], 4
      %s153 = int_to_ptr.vmem [resolvable:$true] %s152
      %155 = dma.vmem_to_hbm [thread:$0]  %s153, 16, %s1, [#allocation4]
    $region17: #{tpu_custom_call.1} parent=1 // pred_fallthru
      _
    // Predicated region
    $region18: #{tpu_custom_call.1} parent=1 // pred_check
      _
    $region19: #{tpu_custom_call.1} parent=1 // pred_check_branch
      %157 = sbr.rel (0) target = $region21
    $region20: #{tpu_custom_call.1} parent=1 // pred_region
      %158 = dma.done [#allocation4], 16
    $region21: #{tpu_custom_call.1} parent=1 // pred_fallthru
      _
    %159 = vsyncpa [#allocation3], 1
    %160 = vsyncpa [#allocation4], 1

</llo_original>
